<compile_context>
chip_gen: v6e
topology: v6e:2x2x1
jax: 0.10.0
libtpu: 0.0.40
codegen_flags: <defaults>
</compile_context>

<pallas_src>
import functools

import jax
import jax.numpy as jnp
from jax import lax
from jax.experimental import pallas as pl
from jax.experimental.pallas import tpu as pltpu


_MAX_S_BLOCK = 256                       # MXU pass height on v6e/v7x (fine on v5e too)
_VMEM_BLOCK_BUDGET = 24 * 1024 * 1024    # bytes for pipelined blocks + matmul temps
_VMEM_LIMIT_BYTES = 48 * 1024 * 1024     # fits v5e/v6e (128 MiB) and v7x (64 MiB)


def _round_up(a, b):
    return (a + b - 1) // b * b


# --------------------------------------------------------------------------- #
# Fused encoder + PLRNN kernel (one S-block per grid step, time-major layout)
# --------------------------------------------------------------------------- #
def _fused_kernel(x_ref, wpad_ref, A_ref, wT_ref, h_ref, zenc_ref, zpred_ref,
                  *, df, n_force):
    """
    x_ref    : (T, SB, dx)  bf16 time-major observation block
    wpad_ref : (dx, dz)     bf16 encoder weight^T, zero-padded from df to dz cols
    A_ref    : (1, dz)      f32 diagonal transition
    wT_ref   : (dz, dz)     bf16 W^T (kernel computes relu(z) @ W^T)
    h_ref    : (1, dz)      f32 bias
    zenc_ref : (T, SB, dz)  f32 encoder output (cols >= df are zero)
    zpred_ref: (T, SB, dz)  f32 latent trajectory (first df cols used downstream)
    """
    T, SB, dx = x_ref.shape
    dz = wT_ref.shape[0]

    # ---- encoder: ONE MXU matmul for the whole (T*SB) row block ------------ #
    x2 = x_ref[...].reshape(T * SB, dx)                                # bf16
    zenc2 = jnp.dot(x2, wpad_ref[...], preferred_element_type=jnp.float32)
    zenc3 = zenc2.reshape(T, SB, dz)                                   # f32
    zenc_ref[...] = zenc3                                              # lane-dense, dz wide

    # ---- loop-invariant constants (hoisted) --------------------------------- #
    A = A_ref[...]                                                     # (1, dz) f32
    h = h_ref[...]                                                     # (1, dz) f32
    Wt = wT_ref[...]                                                   # (dz, dz) bf16
    force_mask = lax.broadcasted_iota(jnp.int32, (1, dz), 1) < df      # (1, dz)

    def recurrence(z, zenc_t, forced_now):
        forced = jnp.where(force_mask, zenc_t, z)                      # VPU blend, f32
        if forced_now is True:          # trace-time decision (unrolled path)
            z_in = forced
        elif forced_now is False:
            z_in = z
        else:                           # traced predicate (fori path)
            z_in = jnp.where(forced_now, forced, z)
        relu = jnp.maximum(z_in, 0.0).astype(Wt.dtype)                 # bf16 for MXU
        return (A * z_in
                + jnp.dot(relu, Wt, preferred_element_type=jnp.float32)
                + h)

    z0 = jnp.zeros((SB, dz), jnp.float32)
    # Fully unroll + slice the in-register encoder output only when small.
    unrolled = (T <= 32) and (T * SB * dz * 4 <= 64 * 1024)
    if unrolled:
        z = z0
        for t in range(T):
            z = recurrence(z, zenc3[t], (t % n_force) == 0)
            zpred_ref[t] = z                       # (SB, dz) full-sublane store
    else:
        def body(t, z):
            zenc_t = zenc_ref[t]                   # (SB, dz) slab from VMEM
            if n_force == 1:
                z_new = recurrence(z, zenc_t, True)
            else:
                z_new = recurrence(z, zenc_t, (t % n_force) == 0)
            zpred_ref[t] = z_new
            return z_new
        lax.fori_loop(0, T, body, z0, unroll=4)


def model_forward(x, w_encT_pad, A, Wt, h, *, df, n_force):
    """x: (S, T, dx) f32 -> (z_enc (S, T, df), z_pred (S, T, df))."""
    S, T, dx = x.shape
    dz = Wt.shape[0]

    # ---- choose S block: biggest MXU-friendly block that fits VMEM ---------- #
    SB = min(_MAX_S_BLOCK, _round_up(S, 8))

    def _blocks_bytes(sb):
        x_blk = T * sb * dx * 2            # bf16 input block
        out_blk = T * sb * dz * 4          # f32 output block
        # double-buffered in/out blocks + matmul result temporaries
        return 2 * x_blk + 2 * 2 * out_blk + 2 * out_blk

    while SB > 8 and _blocks_bytes(SB) > _VMEM_BLOCK_BUDGET:
        SB = max(8, _round_up(SB // 2, 8))
    S_pad = _round_up(S, SB)
    # Keep >= 2 grid steps when possible so both v7x TensorCores get work.
    if S_pad // SB == 1 and SB > 8:
        SB = max(8, _round_up(SB // 2, 8))
        S_pad = _round_up(S, SB)
    grid = (S_pad // SB,)

    # time-major, bf16 input (halves DMA bytes, bf16-native MXU)
    x_t = jnp.swapaxes(x, 0, 1).astype(jnp.bfloat16)                   # (T, S, dx)
    if S_pad != S:
        x_t = jnp.pad(x_t, ((0, 0), (0, S_pad - S), (0, 0)))

    kernel = functools.partial(_fused_kernel, df=df, n_force=n_force)
    full2d = lambda i: (0, 0)

    zenc_t, zpred_t = pl.pallas_call(
        kernel,
        grid=grid,
        in_specs=[
            pl.BlockSpec((T, SB, dx), lambda i: (0, i, 0)),   # x block (time-major)
            pl.BlockSpec((dx, dz), full2d),                   # padded encoder W^T
            pl.BlockSpec((1, dz), full2d),                    # A
            pl.BlockSpec((dz, dz), full2d),                   # W^T
            pl.BlockSpec((1, dz), full2d),                    # h
        ],
        out_specs=(
            pl.BlockSpec((T, SB, dz), lambda i: (0, i, 0)),
            pl.BlockSpec((T, SB, dz), lambda i: (0, i, 0)),
        ),
        out_shape=(
            jax.ShapeDtypeStruct((T, S_pad, dz), jnp.float32),
            jax.ShapeDtypeStruct((T, S_pad, dz), jnp.float32),
        ),
        compiler_params=pltpu.CompilerParams(
            dimension_semantics=("parallel",),      # S blocks independent -> megacore
            vmem_limit_bytes=_VMEM_LIMIT_BYTES),
    )(x_t, w_encT_pad.astype(jnp.bfloat16), A, Wt.astype(jnp.bfloat16), h)

    # layout plumbing only: back to (S, T, .) and slice the df columns
    z_enc = jnp.swapaxes(zenc_t, 0, 1)[:S, :, :df]
    z_pred = jnp.swapaxes(zpred_t, 0, 1)[:S, :, :df]
    return z_enc, z_pred


# --------------------------------------------------------------------------- #
# Model wrapper (parameter container + forward glue)
# --------------------------------------------------------------------------- #
class PallasModel:
    def __init__(self, dx, df, dz, key):
        assert dz >= df
        k1, k2, k3 = jax.random.split(key, 3)
        # EncoderLinear: nn.Linear(dx, df, bias=False) -> weight (df, dx).
        w_enc = jax.random.normal(k1, (df, dx), jnp.float32) / jnp.sqrt(dx)
        # Pre-transpose and zero-pad to dz columns once, so teacher forcing is a
        # pure lane-masked select in the kernel (no per-step concatenate).
        self.w_encT_pad = jnp.zeros((dx, dz), jnp.float32).at[:, :df].set(w_enc.T)
        # PLRNN parameters A (dz,), W (dz, dz), h (dz,) in kernel-friendly layout.
        self.A = (0.9 * jnp.ones((dz,), jnp.float32)).reshape(1, dz)
        self.Wt = (0.1 * jax.random.normal(k2, (dz, dz), jnp.float32)
                   / jnp.sqrt(dz)).T                      # kernel does relu(z) @ W^T
        self.h = (0.01 * jax.random.normal(k3, (dz,), jnp.float32)).reshape(1, dz)
        self.dx, self.df, self.dz = dx, df, dz

    def forward(self, x, n=None, s=None):
        """x: (S, T, dx). Returns (z_enc (S,T,df), z_predicted (S,T,df), entropy)."""
        S, T, dx = x.shape
        assert dx == self.dx
        # TODO(synk): external input `s` (dim_s > 0) of the PLRNN is not modeled.
        n_force = 1 if n is None else int(n)
        z_enc, z_pred = model_forward(
            x, self.w_encT_pad, self.A, self.Wt, self.h,
            df=self.df, n_force=n_force)
        # TODO(synk): deterministic linear encoder -> variational entropy is 0.
        entropy = jnp.zeros((), jnp.float32)
        return z_enc, z_pred, entropy


# --------------------------------------------------------------------------- #
# Pure-JAX reference (mirrors the kernel's bf16-operand / f32-accumulate math)
# --------------------------------------------------------------------------- #
def _reference_forward(x, w_encT_pad, A, Wt, h, df, n_force):
    S, T, dx = x.shape
    dz = Wt.shape[0]
    xb = x.astype(jnp.bfloat16).astype(jnp.float32)
    wp = w_encT_pad.astype(jnp.bfloat16).astype(jnp.float32)
    wt = Wt.astype(jnp.bfloat16).astype(jnp.float32)
    z_enc_full = jnp.einsum("std,dz->stz", xb, wp)            # cols >= df are 0
    z_enc = z_enc_full[..., :df]

    def step(z, t):
        forced = jnp.concatenate([z_enc_full[:, t, :df], z[:, df:]], axis=-1)
        z_in = jnp.where((t % n_force) == 0, forced, z)
        relu = jnp.maximum(z_in, 0.0).astype(jnp.bfloat16).astype(jnp.float32)
        z_new = A * z_in + relu @ wt + h
        return z_new, z_new[:, :df]

    _, zs = lax.scan(step, jnp.zeros((S, dz), jnp.float32), jnp.arange(T))
    return z_enc, jnp.transpose(zs, (1, 0, 2))


# --------------------------------------------------------------------------- #
if __name__ == "__main__":
    # dims implied by the module: dx = dim_g + dim_o + dim_p, df = dim_forcing, dz = dim_z
    dg, do, dp = 8, 4, 4
    dx = dg + do + dp          # 16
    df = 16                    # dim_forcing
    dz = 32                    # dim_z
    S, T = 2, 8                # (S, T, dx)

    key = jax.random.PRNGKey(0)
    k_x, k_m = jax.random.split(key)
    x = jax.random.normal(k_x, (S, T, dx), jnp.float32)

    model = PallasModel(dx, df, dz, k_m)
    z_enc, z_pred, entropy = model.forward(x, n=2)
    jax.block_until_ready((z_enc, z_pred, entropy))

    assert z_enc.shape == (S, T, df)
    assert z_pred.shape == (S, T, df)
    assert entropy.shape == ()

    # correctness check against the pure-JAX reference (same bf16 MXU numerics)
    z_enc_ref, z_pred_ref = _reference_forward(
        x, model.w_encT_pad, model.A, model.Wt, model.h, df, 2)
    assert jnp.allclose(z_enc, z_enc_ref, rtol=1e-2, atol=1e-2)
    assert jnp.allclose(z_pred, z_pred_ref, rtol=1e-2, atol=1e-2)

    print("KERNEL_OK")
</pallas_src>

<mosaic_0001>
module attributes {stable_mosaic.version = 11 : i64} {
  func.func @_fused_kernel(%arg0: i32, %arg1: memref<8x8x16xbf16, #tpu.memory_space<vmem>>, %arg2: memref<16x32xbf16, #tpu.memory_space<vmem>>, %arg3: memref<1x32xf32, #tpu.memory_space<vmem>>, %arg4: memref<32x32xbf16, #tpu.memory_space<vmem>>, %arg5: memref<1x32xf32, #tpu.memory_space<vmem>>, %arg6: memref<8x8x32xf32, #tpu.memory_space<vmem>>, %arg7: memref<8x8x32xf32, #tpu.memory_space<vmem>>) attributes {dimension_semantics = [#tpu.dimension_semantics<parallel>], iteration_bounds = array<i64: 1>, scalar_prefetch = 0 : i64, scratch_operands = 0 : i64, tpu.core_type = #tpu.core_type<tc>, window_params = [{transform_indices = @transform_0, window_bounds = array<i64: 8, 8, 16>}, {pipeline_mode = #tpu.pipeline_mode<synchronous>, transform_indices = @transform_1, window_bounds = array<i64: 16, 32>}, {pipeline_mode = #tpu.pipeline_mode<synchronous>, transform_indices = @transform_2, window_bounds = array<i64: 1, 32>}, {pipeline_mode = #tpu.pipeline_mode<synchronous>, transform_indices = @transform_3, window_bounds = array<i64: 32, 32>}, {pipeline_mode = #tpu.pipeline_mode<synchronous>, transform_indices = @transform_4, window_bounds = array<i64: 1, 32>}, {transform_indices = @transform_5, window_bounds = array<i64: 8, 8, 32>}, {transform_indices = @transform_6, window_bounds = array<i64: 8, 8, 32>}]} {
    %c0 = arith.constant 0 : index
    %c0_0 = arith.constant 0 : index
    %c0_1 = arith.constant 0 : index
    %0 = vector.load %arg1[%c0, %c0_0, %c0_1] : memref<8x8x16xbf16, #tpu.memory_space<vmem>>, vector<8x8x16xbf16>
    %1 = vector.shape_cast %0 : vector<8x8x16xbf16> to vector<64x16xbf16>
    %c0_2 = arith.constant 0 : index
    %c0_3 = arith.constant 0 : index
    %2 = vector.load %arg2[%c0_2, %c0_3] : memref<16x32xbf16, #tpu.memory_space<vmem>>, vector<16x32xbf16>
    %cst = arith.constant dense<0.000000e+00> : vector<64x32xf32>
    %3 = tpu.matmul %1, %2, %cst {dimension_numbers = #tpu.dot_dimension_numbers<[1], [0], [0], [1], [0, 0, 1, 1], [], []>} : vector<64x16xbf16>, vector<16x32xbf16>, vector<64x32xf32> -> vector<64x32xf32>
    %4 = vector.shape_cast %3 : vector<64x32xf32> to vector<8x8x32xf32>
    %c0_4 = arith.constant 0 : index
    %c0_5 = arith.constant 0 : index
    %c0_6 = arith.constant 0 : index
    %5 = vector.load %arg6[%c0_4, %c0_5, %c0_6] : memref<8x8x32xf32, #tpu.memory_space<vmem>>, vector<8x8x32xf32>
    tpu.vector_store %arg6[%c0_4, %c0_5, %c0_6], %4 {strides = array<i32>} : memref<8x8x32xf32, #tpu.memory_space<vmem>>, vector<8x8x32xf32>,
    %c0_7 = arith.constant 0 : index
    %c0_8 = arith.constant 0 : index
    %6 = vector.load %arg3[%c0_7, %c0_8] : memref<1x32xf32, #tpu.memory_space<vmem>>, vector<1x32xf32>
    %c0_9 = arith.constant 0 : index
    %c0_10 = arith.constant 0 : index
    %7 = vector.load %arg5[%c0_9, %c0_10] : memref<1x32xf32, #tpu.memory_space<vmem>>, vector<1x32xf32>
    %c0_11 = arith.constant 0 : index
    %c0_12 = arith.constant 0 : index
    %8 = vector.load %arg4[%c0_11, %c0_12] : memref<32x32xbf16, #tpu.memory_space<vmem>>, vector<32x32xbf16>
    %9 = tpu.iota {dimensions = array<i32: 1>} : vector<1x32xi32>
    %c16_i32 = arith.constant 16 : i32
    %10 = vector.broadcast %c16_i32 : i32 to vector<1x32xi32>
    %11 = arith.cmpi slt, %9, %10 : vector<1x32xi32>
    %cst_13 = arith.constant 0.000000e+00 : f32
    %12 = vector.broadcast %cst_13 : f32 to vector<8x32xf32>
    %13 = vector.extract_strided_slice %4 {offsets = [0, 0, 0], sizes = [1, 8, 32], strides = [1, 1, 1]} : vector<8x8x32xf32> to vector<1x8x32xf32>
    %14 = vector.shape_cast %13 : vector<1x8x32xf32> to vector<8x32xf32>
    %15 = vector.shape_cast %11 : vector<1x32xi1> to vector<1x32xi1>
    %16 = vector.broadcast %15 : vector<1x32xi1> to vector<8x32xi1>
    %17 = arith.select %16, %14, %12 : vector<8x32xi1>, vector<8x32xf32>
    %cst_14 = arith.constant 0.000000e+00 : f32
    %18 = vector.broadcast %cst_14 : f32 to vector<8x32xf32>
    %19 = arith.maximumf %17, %18 : vector<8x32xf32>
    %20 = arith.truncf %19 : vector<8x32xf32> to vector<8x32xbf16>
    %21 = vector.broadcast %6 : vector<1x32xf32> to vector<8x32xf32>
    %22 = arith.mulf %21, %17 : vector<8x32xf32>
    %cst_15 = arith.constant dense<0.000000e+00> : vector<8x32xf32>
    %23 = tpu.matmul %20, %8, %cst_15 {dimension_numbers = #tpu.dot_dimension_numbers<[1], [0], [0], [1], [0, 0, 1, 1], [], []>} : vector<8x32xbf16>, vector<32x32xbf16>, vector<8x32xf32> -> vector<8x32xf32>
    %24 = arith.addf %22, %23 : vector<8x32xf32>
    %25 = vector.broadcast %7 : vector<1x32xf32> to vector<8x32xf32>
    %26 = arith.addf %24, %25 : vector<8x32xf32>
    %c0_16 = arith.constant 0 : index
    %c0_17 = arith.constant 0 : index
    %c0_18 = arith.constant 0 : index
    %27 = vector.load %arg7[%c0_16, %c0_17, %c0_18] : memref<8x8x32xf32, #tpu.memory_space<vmem>>, vector<1x8x32xf32>
    %28 = vector.shape_cast %27 : vector<1x8x32xf32> to vector<8x32xf32>
    %29 = vector.shape_cast %26 : vector<8x32xf32> to vector<1x8x32xf32>
    tpu.vector_store %arg7[%c0_16, %c0_17, %c0_18], %29 {strides = array<i32>} : memref<8x8x32xf32, #tpu.memory_space<vmem>>, vector<1x8x32xf32>,
    %cst_19 = arith.constant 0.000000e+00 : f32
    %30 = vector.broadcast %cst_19 : f32 to vector<8x32xf32>
    %31 = arith.maximumf %26, %30 : vector<8x32xf32>
    %32 = arith.truncf %31 : vector<8x32xf32> to vector<8x32xbf16>
    %33 = vector.broadcast %6 : vector<1x32xf32> to vector<8x32xf32>
    %34 = arith.mulf %33, %26 : vector<8x32xf32>
    %cst_20 = arith.constant dense<0.000000e+00> : vector<8x32xf32>
    %35 = tpu.matmul %32, %8, %cst_20 {dimension_numbers = #tpu.dot_dimension_numbers<[1], [0], [0], [1], [0, 0, 1, 1], [], []>} : vector<8x32xbf16>, vector<32x32xbf16>, vector<8x32xf32> -> vector<8x32xf32>
    %36 = arith.addf %34, %35 : vector<8x32xf32>
    %37 = vector.broadcast %7 : vector<1x32xf32> to vector<8x32xf32>
    %38 = arith.addf %36, %37 : vector<8x32xf32>
    %c1 = arith.constant 1 : index
    %c0_21 = arith.constant 0 : index
    %c0_22 = arith.constant 0 : index
    %39 = vector.load %arg7[%c1, %c0_21, %c0_22] : memref<8x8x32xf32, #tpu.memory_space<vmem>>, vector<1x8x32xf32>
    %40 = vector.shape_cast %39 : vector<1x8x32xf32> to vector<8x32xf32>
    %41 = vector.shape_cast %38 : vector<8x32xf32> to vector<1x8x32xf32>
    tpu.vector_store %arg7[%c1, %c0_21, %c0_22], %41 {strides = array<i32>} : memref<8x8x32xf32, #tpu.memory_space<vmem>>, vector<1x8x32xf32>,
    %42 = vector.extract_strided_slice %4 {offsets = [2, 0, 0], sizes = [1, 8, 32], strides = [1, 1, 1]} : vector<8x8x32xf32> to vector<1x8x32xf32>
    %43 = vector.shape_cast %42 : vector<1x8x32xf32> to vector<8x32xf32>
    %44 = vector.shape_cast %11 : vector<1x32xi1> to vector<1x32xi1>
    %45 = vector.broadcast %44 : vector<1x32xi1> to vector<8x32xi1>
    %46 = arith.select %45, %43, %38 : vector<8x32xi1>, vector<8x32xf32>
    %cst_23 = arith.constant 0.000000e+00 : f32
    %47 = vector.broadcast %cst_23 : f32 to vector<8x32xf32>
    %48 = arith.maximumf %46, %47 : vector<8x32xf32>
    %49 = arith.truncf %48 : vector<8x32xf32> to vector<8x32xbf16>
    %50 = vector.broadcast %6 : vector<1x32xf32> to vector<8x32xf32>
    %51 = arith.mulf %50, %46 : vector<8x32xf32>
    %cst_24 = arith.constant dense<0.000000e+00> : vector<8x32xf32>
    %52 = tpu.matmul %49, %8, %cst_24 {dimension_numbers = #tpu.dot_dimension_numbers<[1], [0], [0], [1], [0, 0, 1, 1], [], []>} : vector<8x32xbf16>, vector<32x32xbf16>, vector<8x32xf32> -> vector<8x32xf32>
    %53 = arith.addf %51, %52 : vector<8x32xf32>
    %54 = vector.broadcast %7 : vector<1x32xf32> to vector<8x32xf32>
    %55 = arith.addf %53, %54 : vector<8x32xf32>
    %c2 = arith.constant 2 : index
    %c0_25 = arith.constant 0 : index
    %c0_26 = arith.constant 0 : index
    %56 = vector.load %arg7[%c2, %c0_25, %c0_26] : memref<8x8x32xf32, #tpu.memory_space<vmem>>, vector<1x8x32xf32>
    %57 = vector.shape_cast %56 : vector<1x8x32xf32> to vector<8x32xf32>
    %58 = vector.shape_cast %55 : vector<8x32xf32> to vector<1x8x32xf32>
    tpu.vector_store %arg7[%c2, %c0_25, %c0_26], %58 {strides = array<i32>} : memref<8x8x32xf32, #tpu.memory_space<vmem>>, vector<1x8x32xf32>,
    %cst_27 = arith.constant 0.000000e+00 : f32
    %59 = vector.broadcast %cst_27 : f32 to vector<8x32xf32>
    %60 = arith.maximumf %55, %59 : vector<8x32xf32>
    %61 = arith.truncf %60 : vector<8x32xf32> to vector<8x32xbf16>
    %62 = vector.broadcast %6 : vector<1x32xf32> to vector<8x32xf32>
    %63 = arith.mulf %62, %55 : vector<8x32xf32>
    %cst_28 = arith.constant dense<0.000000e+00> : vector<8x32xf32>
    %64 = tpu.matmul %61, %8, %cst_28 {dimension_numbers = #tpu.dot_dimension_numbers<[1], [0], [0], [1], [0, 0, 1, 1], [], []>} : vector<8x32xbf16>, vector<32x32xbf16>, vector<8x32xf32> -> vector<8x32xf32>
    %65 = arith.addf %63, %64 : vector<8x32xf32>
    %66 = vector.broadcast %7 : vector<1x32xf32> to vector<8x32xf32>
    %67 = arith.addf %65, %66 : vector<8x32xf32>
    %c3 = arith.constant 3 : index
    %c0_29 = arith.constant 0 : index
    %c0_30 = arith.constant 0 : index
    %68 = vector.load %arg7[%c3, %c0_29, %c0_30] : memref<8x8x32xf32, #tpu.memory_space<vmem>>, vector<1x8x32xf32>
    %69 = vector.shape_cast %68 : vector<1x8x32xf32> to vector<8x32xf32>
    %70 = vector.shape_cast %67 : vector<8x32xf32> to vector<1x8x32xf32>
    tpu.vector_store %arg7[%c3, %c0_29, %c0_30], %70 {strides = array<i32>} : memref<8x8x32xf32, #tpu.memory_space<vmem>>, vector<1x8x32xf32>,
    %71 = vector.extract_strided_slice %4 {offsets = [4, 0, 0], sizes = [1, 8, 32], strides = [1, 1, 1]} : vector<8x8x32xf32> to vector<1x8x32xf32>
    %72 = vector.shape_cast %71 : vector<1x8x32xf32> to vector<8x32xf32>
    %73 = vector.shape_cast %11 : vector<1x32xi1> to vector<1x32xi1>
    %74 = vector.broadcast %73 : vector<1x32xi1> to vector<8x32xi1>
    %75 = arith.select %74, %72, %67 : vector<8x32xi1>, vector<8x32xf32>
    %cst_31 = arith.constant 0.000000e+00 : f32
    %76 = vector.broadcast %cst_31 : f32 to vector<8x32xf32>
    %77 = arith.maximumf %75, %76 : vector<8x32xf32>
    %78 = arith.truncf %77 : vector<8x32xf32> to vector<8x32xbf16>
    %79 = vector.broadcast %6 : vector<1x32xf32> to vector<8x32xf32>
    %80 = arith.mulf %79, %75 : vector<8x32xf32>
    %cst_32 = arith.constant dense<0.000000e+00> : vector<8x32xf32>
    %81 = tpu.matmul %78, %8, %cst_32 {dimension_numbers = #tpu.dot_dimension_numbers<[1], [0], [0], [1], [0, 0, 1, 1], [], []>} : vector<8x32xbf16>, vector<32x32xbf16>, vector<8x32xf32> -> vector<8x32xf32>
    %82 = arith.addf %80, %81 : vector<8x32xf32>
    %83 = vector.broadcast %7 : vector<1x32xf32> to vector<8x32xf32>
    %84 = arith.addf %82, %83 : vector<8x32xf32>
    %c4 = arith.constant 4 : index
    %c0_33 = arith.constant 0 : index
    %c0_34 = arith.constant 0 : index
    %85 = vector.load %arg7[%c4, %c0_33, %c0_34] : memref<8x8x32xf32, #tpu.memory_space<vmem>>, vector<1x8x32xf32>
    %86 = vector.shape_cast %85 : vector<1x8x32xf32> to vector<8x32xf32>
    %87 = vector.shape_cast %84 : vector<8x32xf32> to vector<1x8x32xf32>
    tpu.vector_store %arg7[%c4, %c0_33, %c0_34], %87 {strides = array<i32>} : memref<8x8x32xf32, #tpu.memory_space<vmem>>, vector<1x8x32xf32>,
    %cst_35 = arith.constant 0.000000e+00 : f32
    %88 = vector.broadcast %cst_35 : f32 to vector<8x32xf32>
    %89 = arith.maximumf %84, %88 : vector<8x32xf32>
    %90 = arith.truncf %89 : vector<8x32xf32> to vector<8x32xbf16>
    %91 = vector.broadcast %6 : vector<1x32xf32> to vector<8x32xf32>
    %92 = arith.mulf %91, %84 : vector<8x32xf32>
    %cst_36 = arith.constant dense<0.000000e+00> : vector<8x32xf32>
    %93 = tpu.matmul %90, %8, %cst_36 {dimension_numbers = #tpu.dot_dimension_numbers<[1], [0], [0], [1], [0, 0, 1, 1], [], []>} : vector<8x32xbf16>, vector<32x32xbf16>, vector<8x32xf32> -> vector<8x32xf32>
    %94 = arith.addf %92, %93 : vector<8x32xf32>
    %95 = vector.broadcast %7 : vector<1x32xf32> to vector<8x32xf32>
    %96 = arith.addf %94, %95 : vector<8x32xf32>
    %c5 = arith.constant 5 : index
    %c0_37 = arith.constant 0 : index
    %c0_38 = arith.constant 0 : index
    %97 = vector.load %arg7[%c5, %c0_37, %c0_38] : memref<8x8x32xf32, #tpu.memory_space<vmem>>, vector<1x8x32xf32>
    %98 = vector.shape_cast %97 : vector<1x8x32xf32> to vector<8x32xf32>
    %99 = vector.shape_cast %96 : vector<8x32xf32> to vector<1x8x32xf32>
    tpu.vector_store %arg7[%c5, %c0_37, %c0_38], %99 {strides = array<i32>} : memref<8x8x32xf32, #tpu.memory_space<vmem>>, vector<1x8x32xf32>,
    %100 = vector.extract_strided_slice %4 {offsets = [6, 0, 0], sizes = [1, 8, 32], strides = [1, 1, 1]} : vector<8x8x32xf32> to vector<1x8x32xf32>
    %101 = vector.shape_cast %100 : vector<1x8x32xf32> to vector<8x32xf32>
    %102 = vector.shape_cast %11 : vector<1x32xi1> to vector<1x32xi1>
    %103 = vector.broadcast %102 : vector<1x32xi1> to vector<8x32xi1>
    %104 = arith.select %103, %101, %96 : vector<8x32xi1>, vector<8x32xf32>
    %cst_39 = arith.constant 0.000000e+00 : f32
    %105 = vector.broadcast %cst_39 : f32 to vector<8x32xf32>
    %106 = arith.maximumf %104, %105 : vector<8x32xf32>
    %107 = arith.truncf %106 : vector<8x32xf32> to vector<8x32xbf16>
    %108 = vector.broadcast %6 : vector<1x32xf32> to vector<8x32xf32>
    %109 = arith.mulf %108, %104 : vector<8x32xf32>
    %cst_40 = arith.constant dense<0.000000e+00> : vector<8x32xf32>
    %110 = tpu.matmul %107, %8, %cst_40 {dimension_numbers = #tpu.dot_dimension_numbers<[1], [0], [0], [1], [0, 0, 1, 1], [], []>} : vector<8x32xbf16>, vector<32x32xbf16>, vector<8x32xf32> -> vector<8x32xf32>
    %111 = arith.addf %109, %110 : vector<8x32xf32>
    %112 = vector.broadcast %7 : vector<1x32xf32> to vector<8x32xf32>
    %113 = arith.addf %111, %112 : vector<8x32xf32>
    %c6 = arith.constant 6 : index
    %c0_41 = arith.constant 0 : index
    %c0_42 = arith.constant 0 : index
    %114 = vector.load %arg7[%c6, %c0_41, %c0_42] : memref<8x8x32xf32, #tpu.memory_space<vmem>>, vector<1x8x32xf32>
    %115 = vector.shape_cast %114 : vector<1x8x32xf32> to vector<8x32xf32>
    %116 = vector.shape_cast %113 : vector<8x32xf32> to vector<1x8x32xf32>
    tpu.vector_store %arg7[%c6, %c0_41, %c0_42], %116 {strides = array<i32>} : memref<8x8x32xf32, #tpu.memory_space<vmem>>, vector<1x8x32xf32>,
    %cst_43 = arith.constant 0.000000e+00 : f32
    %117 = vector.broadcast %cst_43 : f32 to vector<8x32xf32>
    %118 = arith.maximumf %113, %117 : vector<8x32xf32>
    %119 = arith.truncf %118 : vector<8x32xf32> to vector<8x32xbf16>
    %120 = vector.broadcast %6 : vector<1x32xf32> to vector<8x32xf32>
    %121 = arith.mulf %120, %113 : vector<8x32xf32>
    %cst_44 = arith.constant dense<0.000000e+00> : vector<8x32xf32>
    %122 = tpu.matmul %119, %8, %cst_44 {dimension_numbers = #tpu.dot_dimension_numbers<[1], [0], [0], [1], [0, 0, 1, 1], [], []>} : vector<8x32xbf16>, vector<32x32xbf16>, vector<8x32xf32> -> vector<8x32xf32>
    %123 = arith.addf %121, %122 : vector<8x32xf32>
    %124 = vector.broadcast %7 : vector<1x32xf32> to vector<8x32xf32>
    %125 = arith.addf %123, %124 : vector<8x32xf32>
    %c7 = arith.constant 7 : index
    %c0_45 = arith.constant 0 : index
    %c0_46 = arith.constant 0 : index
    %126 = vector.load %arg7[%c7, %c0_45, %c0_46] : memref<8x8x32xf32, #tpu.memory_space<vmem>>, vector<1x8x32xf32>
    %127 = vector.shape_cast %126 : vector<1x8x32xf32> to vector<8x32xf32>
    %128 = vector.shape_cast %125 : vector<8x32xf32> to vector<1x8x32xf32>
    tpu.vector_store %arg7[%c7, %c0_45, %c0_46], %128 {strides = array<i32>} : memref<8x8x32xf32, #tpu.memory_space<vmem>>, vector<1x8x32xf32>,
    return
  }
  func.func @transform_0(%arg0: i32) -> (i32, i32, i32) {
    %c0_i32 = arith.constant 0 : i32
    %c0_i32_0 = arith.constant 0 : i32
    %c0_i32_1 = arith.constant 0 : i32
    return %c0_i32, %arg0, %c0_i32_0 : i32, i32, i32
  }
  func.func @transform_1(%arg0: i32) -> (i32, i32) {
    %c0_i32 = arith.constant 0 : i32
    %c0_i32_0 = arith.constant 0 : i32
    %c0_i32_1 = arith.constant 0 : i32
    return %c0_i32, %c0_i32_0 : i32, i32
  }
  func.func @transform_2(%arg0: i32) -> (i32, i32) {
    %c0_i32 = arith.constant 0 : i32
    %c0_i32_0 = arith.constant 0 : i32
    %c0_i32_1 = arith.constant 0 : i32
    return %c0_i32, %c0_i32_0 : i32, i32
  }
  func.func @transform_3(%arg0: i32) -> (i32, i32) {
    %c0_i32 = arith.constant 0 : i32
    %c0_i32_0 = arith.constant 0 : i32
    %c0_i32_1 = arith.constant 0 : i32
    return %c0_i32, %c0_i32_0 : i32, i32
  }
  func.func @transform_4(%arg0: i32) -> (i32, i32) {
    %c0_i32 = arith.constant 0 : i32
    %c0_i32_0 = arith.constant 0 : i32
    %c0_i32_1 = arith.constant 0 : i32
    return %c0_i32, %c0_i32_0 : i32, i32
  }
  func.func @transform_5(%arg0: i32) -> (i32, i32, i32) {
    %c0_i32 = arith.constant 0 : i32
    %c0_i32_0 = arith.constant 0 : i32
    %c0_i32_1 = arith.constant 0 : i32
    return %c0_i32, %arg0, %c0_i32_0 : i32, i32, i32
  }
  func.func @transform_6(%arg0: i32) -> (i32, i32, i32) {
    %c0_i32 = arith.constant 0 : i32
    %c0_i32_0 = arith.constant 0 : i32
    %c0_i32_1 = arith.constant 0 : i32
    return %c0_i32, %arg0, %c0_i32_0 : i32, i32, i32
  }
}

</mosaic_0001>

<llo_original>
// kernel: tpu_custom_call.1
$region0: #{tpu_custom_call.1}
  #allocation0 [shape = 'u32[]', space=smem, size = 0x4, offset = 0x4, fixed_abs, tag = 'smem constant byte address 0x4 - core index']
  #allocation1 [shape = 'u32[144,128]{1,0:T(1,128)}', space=vmem, size = 0x12000, scoped, tag = 'internal scratch']
  %s0 = inlined_call_operand.hbm [shape: bf16[8,8,16], index: 0, kind: input, shape index: {}]
  %s1 = inlined_call_operand.hbm [shape: bf16[16,32], index: 1, kind: input, shape index: {}]
  %s2 = inlined_call_operand.vmem [shape: f32[1,32], index: 2, kind: input, shape index: {}]
  %s3 = inlined_call_operand.hbm [shape: bf16[32,32], index: 3, kind: input, shape index: {}]
  %s4 = inlined_call_operand.vmem [shape: f32[1,32], index: 4, kind: input, shape index: {}]
  %s5 = inlined_call_operand.hbm [shape: f32[8,8,32], index: 5, kind: output, shape index: {0}]
  %s6 = inlined_call_operand.hbm [shape: f32[8,8,32], index: 6, kind: output, shape index: {1}]
  %7 = xla_tuple %s5, %s6
  %s8 = sld [smem:[#allocation0]]
  $region50: #{tpu_custom_call.1} parent=0
    _
  %s10 = ssub.s32 1, %s8
  %s11 = scalar_select 0, %s10, %s8
  $region1: #{tpu_custom_call.1} parent=0
    #allocation2 [shape = 'u8[16384]{0}', space=vmem, size = 0x4000, scoped, tag = 'input window, operand 0, single buffered']
    #allocation3 [shape = 's32[1]{0}', space=sflag, size = 0x4, scoped, tag = 'scoped memory for tpu_custom_call.1']
    #allocation4 [shape = 's32[1]{0}', space=sflag, size = 0x4, scoped, tag = 'scoped memory for tpu_custom_call.1']
    #allocation5 [shape = 'u8[4096]{0}', space=vmem, size = 0x1000, scoped, tag = 'input window, operand 1, single buffered']
    #allocation6 [shape = 's32[1]{0}', space=sflag, size = 0x4, scoped, tag = 'scoped memory for tpu_custom_call.1']
    #allocation7 [shape = 'u8[8192]{0}', space=vmem, size = 0x2000, scoped, tag = 'input window, operand 3, single buffered']
    #allocation8 [shape = 'u8[32768]{0}', space=vmem, size = 0x8000, scoped, tag = 'output window, operand 0, single buffered']
    #allocation9 [shape = 'u8[32768]{0}', space=vmem, size = 0x8000, scoped, tag = 'output window, operand 1, single buffered']
    #allocation10 [shape = 's32[1]{0}', space=sflag, size = 0x4, scoped, tag = 'scoped memory for tpu_custom_call.1']
    %12 = vsyncpa [#allocation3], 0
    %13 = vsyncpa [#allocation6], 0
    %14 = vsyncpa [#allocation4], 0
    %15 = vsyncpa [#allocation10], 0
    // Predicated region
    $region2: #{tpu_custom_call.1} parent=1 // pred_check
      _
    $region3: #{tpu_custom_call.1} parent=1 // pred_check_branch
      %17 = sbr.rel (0) target = $region5
    $region4: #{tpu_custom_call.1} parent=1 // pred_region
      %s19 = ssub.s32 512, 512
      %20 = vsyncadd [#allocation3], %s19
      %s21 = sshll.u32 [#allocation2], 4
      %s22 = int_to_ptr.vmem [resolvable:$true] %s21
      %27 = dma.hbm_to_vmem [thread:$0]  %s0, 512, %s22, [#allocation3], 64, 64, 4
    $region5: #{tpu_custom_call.1} parent=1 // pred_fallthru
      _
    // Predicated region
    $region6: #{tpu_custom_call.1} parent=1 // pred_check
      _
    $region7: #{tpu_custom_call.1} parent=1 // pred_check_branch
      %29 = sbr.rel (0) target = $region9
    $region8: #{tpu_custom_call.1} parent=1 // pred_region
      %s31 = ssub.s32 128, 128
      %32 = vsyncadd [#allocation6], %s31
      %s33 = sshll.u32 [#allocation5], 4
      %s34 = int_to_ptr.vmem [resolvable:$true] %s33
      %39 = dma.hbm_to_vmem [thread:$0]  %s1, 128, %s34, [#allocation6], 64, 64, 4
    $region9: #{tpu_custom_call.1} parent=1 // pred_fallthru
      _
    // Predicated region
    $region10: #{tpu_custom_call.1} parent=1 // pred_check
      _
    $region11: #{tpu_custom_call.1} parent=1 // pred_check_branch
      %41 = sbr.rel (0) target = $region13
    $region12: #{tpu_custom_call.1} parent=1 // pred_region
      _
    $region13: #{tpu_custom_call.1} parent=1 // pred_fallthru
      _
    // Predicated region
    $region14: #{tpu_custom_call.1} parent=1 // pred_check
      _
    $region15: #{tpu_custom_call.1} parent=1 // pred_check_branch
      %43 = sbr.rel (0) target = $region17
    $region16: #{tpu_custom_call.1} parent=1 // pred_region
      %s45 = ssub.s32 256, 256
      %46 = vsyncadd [#allocation6], %s45
      %s47 = sshll.u32 [#allocation7], 4
      %s48 = int_to_ptr.vmem [resolvable:$true] %s47
      %53 = dma.hbm_to_vmem [thread:$0]  %s3, 256, %s48, [#allocation6], 64, 64, 4
    $region17: #{tpu_custom_call.1} parent=1 // pred_fallthru
      _
    // Predicated region
    $region18: #{tpu_custom_call.1} parent=1 // pred_check
      _
    $region19: #{tpu_custom_call.1} parent=1 // pred_check_branch
      %55 = sbr.rel (0) target = $region21
    $region20: #{tpu_custom_call.1} parent=1 // pred_region
      _
    $region21: #{tpu_custom_call.1} parent=1 // pred_fallthru
      _
    // Predicated region
    $region22: #{tpu_custom_call.1} parent=1 // pred_check
      _
    $region23: #{tpu_custom_call.1} parent=1 // pred_check_branch
      %57 = sbr.rel (0) target = $region25
    $region24: #{tpu_custom_call.1} parent=1 // pred_region
      %58 = dma.done [#allocation3], 512
    $region25: #{tpu_custom_call.1} parent=1 // pred_fallthru
      _
    // Predicated region
    $region26: #{tpu_custom_call.1} parent=1 // pred_check
      _
    $region27: #{tpu_custom_call.1} parent=1 // pred_check_branch
      %60 = sbr.rel (0) target = $region29
    $region28: #{tpu_custom_call.1} parent=1 // pred_region
      %61 = dma.done [#allocation6], 128
    $region29: #{tpu_custom_call.1} parent=1 // pred_fallthru
      _
    // Predicated region
    $region30: #{tpu_custom_call.1} parent=1 // pred_check
      _
    $region31: #{tpu_custom_call.1} parent=1 // pred_check_branch
      %63 = sbr.rel (0) target = $region33
    $region32: #{tpu_custom_call.1} parent=1 // pred_region
      %64 = dma.done [#allocation6], 256
    $region33: #{tpu_custom_call.1} parent=1 // pred_fallthru
      _
    %v66 = vld [vmem:[#allocation2] sm:$0xf]
    %v67 = vld [vmem:[#allocation2 + $0x4] sm:$0xf]
    %v68 = vld [vmem:[#allocation2 + $0x8] sm:$0xf]
    %v69 = vld [vmem:[#allocation2 + $0xc] sm:$0xf]
    %v70 = vld [vmem:[#allocation2 + $0x10] sm:$0xf]
    %v71 = vld [vmem:[#allocation2 + $0x14] sm:$0xf]
    %v72 = vld [vmem:[#allocation2 + $0x18] sm:$0xf]
    %v73 = vld [vmem:[#allocation2 + $0x1c] sm:$0xf]
    %v74 = vld [vmem:[#allocation5] sm:$0xf]
    %v75 = vld [vmem:[#allocation5 + $0x4] sm:$0xf]
    %v84 = vunpack.c.l.b16 %v66
    %v85 = vunpack.c.l.b16 %v67
    %v86 = vunpack.c.l.b16 %v68
    %v87 = vunpack.c.l.b16 %v69
    %v88 = vunpack.c.l.b16 %v70
    %v89 = vunpack.c.l.b16 %v71
    %v90 = vunpack.c.l.b16 %v72
    %v91 = vunpack.c.l.b16 %v73
    %v92 = vpack.c.b16 %v85, %v84
    %v93 = vpack.c.b16 %v87, %v86
    %v94 = vpack.c.b16 %v89, %v88
    %v95 = vpack.c.b16 %v91, %v90
    %v98 = vunpack.c.l.b16 %v74
    %v99 = vunpack.c.l.b16 %v75
    %v100 = vpack.c.b16 %v99, %v98
    %vm102 = vcmask 130048
    %v104 = vsel %vm102, %v92, 0
    %v107 = vsel %vm102, %v93, 0
    %v110 = vsel %vm102, %v94, 0
    %v113 = vsel %vm102, %v95, 0
    %115 = vmatprep.subr.bf16.mxu0 0
    %116 = vmatpush1.bf16.msra.mxu0 0
    %117 = vmatprep.subr.bf16.mxu0 0
    %118 = vmatpush1.bf16.msra.mxu0 0
    %119 = vmatprep.subr.bf16.mxu0 0
    %120 = vmatpush1.bf16.msra.mxu0 0
    %121 = vmatprep.subr.bf16.mxu0 0
    %122 = vmatpush1.bf16.msra.mxu0 0
    %123 = vmatprep.subr.bf16.mxu0 0
    %124 = vmatpush1.bf16.msra.mxu0 0
    %125 = vmatprep.subr.bf16.mxu0 0
    %126 = vmatpush1.bf16.msra.mxu0 0
    %127 = vmatprep.subr.bf16.mxu0 0
    %128 = vmatpush1.bf16.msra.mxu0 0
    %129 = vmatprep.subr.bf16.mxu0 0
    %130 = vmatpush1.bf16.msra.mxu0 %v100
    %131 = vmatprep.subr.bf16.mxu0 0
    %132 = vmatpush2.bf16.msra.mxu0 0
    %133 = vmatprep.subr.bf16.mxu0 0
    %134 = vmatpush2.bf16.msra.mxu0 0
    %135 = vmatprep.subr.bf16.mxu0 0
    %136 = vmatpush2.bf16.msra.mxu0 0
    %137 = vmatprep.subr.bf16.mxu0 0
    %138 = vmatpush2.bf16.msra.mxu0 0
    %139 = vmatprep.subr.bf16.mxu0 0
    %140 = vmatpush2.bf16.msra.mxu0 0
    %141 = vmatprep.subr.bf16.mxu0 0
    %142 = vmatpush2.bf16.msra.mxu0 0
    %143 = vmatprep.subr.bf16.mxu0 0
    %144 = vmatpush2.bf16.msra.mxu0 0
    %145 = vmatprep.subr.bf16.mxu0 0
    %146 = vmatpush2.bf16.msra.mxu0 0
    %147 = vmatprep.mubr.bf16.mxu0 0
    %148 = vmatmul.mubr.bf16.gmra.mxu0 %v104
    %v149 = vpop.f32.mrf.mxu0
    %v150 = vadd.f32 0.0, %v149
    %v151 = vpop.f32.mrf.mxu0
    %v152 = vpop.f32.mrf.mxu0
    %v153 = vadd.f32 0.0, %v152
    %v154 = vpop.f32.mrf.mxu0
    %155 = vmatprep.mubr.bf16.mxu0 0
    %156 = vmatmul.mubr.bf16.gmra.mxu0 %v107
    %v157 = vpop.f32.mrf.mxu0
    %v158 = vadd.f32 0.0, %v157
    %v159 = vpop.f32.mrf.mxu0
    %v160 = vpop.f32.mrf.mxu0
    %v161 = vadd.f32 0.0, %v160
    %v162 = vpop.f32.mrf.mxu0
    %163 = vmatprep.mubr.bf16.mxu0 0
    %164 = vmatmul.mubr.bf16.gmra.mxu0 %v110
    %v165 = vpop.f32.mrf.mxu0
    %v166 = vadd.f32 0.0, %v165
    %v167 = vpop.f32.mrf.mxu0
    %v168 = vpop.f32.mrf.mxu0
    %v169 = vadd.f32 0.0, %v168
    %v170 = vpop.f32.mrf.mxu0
    %171 = vmatprep.mubr.bf16.mxu0 0
    %172 = vmatmul.mubr.bf16.gmra.mxu0 %v113
    %v173 = vpop.f32.mrf.mxu0
    %v174 = vadd.f32 0.0, %v173
    %v175 = vpop.f32.mrf.mxu0
    %v176 = vpop.f32.mrf.mxu0
    %v177 = vadd.f32 0.0, %v176
    %v178 = vpop.f32.mrf.mxu0
    %179 = vdwg.mxu0
    %vm180 = vcmask 261120
    %181 = vst.msk [vmem:[#allocation8] sm:$0xff] %vm180, %v150
    %182 = vst.msk [vmem:[#allocation8 + $0x8] sm:$0xff] %vm180, %v153
    %183 = vst.msk [vmem:[#allocation8 + $0x10] sm:$0xff] %vm180, %v158
    %184 = vst.msk [vmem:[#allocation8 + $0x18] sm:$0xff] %vm180, %v161
    %185 = vst.msk [vmem:[#allocation8 + $0x20] sm:$0xff] %vm180, %v166
    %186 = vst.msk [vmem:[#allocation8 + $0x28] sm:$0xff] %vm180, %v169
    %187 = vst.msk [vmem:[#allocation8 + $0x30] sm:$0xff] %vm180, %v174
    %188 = vst.msk [vmem:[#allocation8 + $0x38] sm:$0xff] %vm180, %v177
    %v189 = vld [vmem:[%s2] sm:$0x1]
    %v190 = vld [vmem:[%s4] sm:$0x1]
    %v191 = vld [vmem:[#allocation7] sm:$0xf]
    %v192 = vld [vmem:[#allocation7 + $0x4] sm:$0xf]
    %v193 = vld [vmem:[#allocation7 + $0x8] sm:$0xf]
    %v194 = vld [vmem:[#allocation7 + $0xc] sm:$0xf]
    %v195 = vlaneseq
    %v196 = vand.u32 %v195, 127
    %vm197 = vcmp.lt.s32.totalorder %v196, 16
    %v198 = vsel %vm197, 1, 0
    %vm199 = vcmp.eq.s32.totalorder %v198, 1
    %v200 = vsel %vm199, %v150, 0.0
    %v201 = vmax.f32 %v200, 0.0
    %v202 = vpack.c.bf16 %v201, %v201
    %v204 = vlaneseq
    %v205 = vshrl.u32 %v204, 7
    %v206 = vsub.s32 0, %v205
    %v207 = vrot.slane %v189, %v206
    %v209 = vmul.f32 %v207, %v200
    %v214 = vunpack.c.l.b16 %v191
    %v215 = vunpack.c.l.b16 %v192
    %v216 = vunpack.c.l.b16 %v193
    %v217 = vunpack.c.l.b16 %v194
    %v218 = vpack.c.b16 %v215, %v214
    %v219 = vpack.c.b16 %v217, %v216
    %v223 = vsel %vm180, %v202, 0
    %225 = vmatprep.subr.bf16.mxu0 0
    %226 = vmatpush1.bf16.msra.mxu0 0
    %227 = vmatprep.subr.bf16.mxu0 0
    %228 = vmatpush1.bf16.msra.mxu0 0
    %229 = vmatprep.subr.bf16.mxu0 0
    %230 = vmatpush1.bf16.msra.mxu0 0
    %231 = vmatprep.subr.bf16.mxu0 0
    %232 = vmatpush1.bf16.msra.mxu0 0
    %233 = vmatprep.subr.bf16.mxu0 0
    %234 = vmatpush1.bf16.msra.mxu0 0
    %235 = vmatprep.subr.bf16.mxu0 0
    %236 = vmatpush1.bf16.msra.mxu0 0
    %237 = vmatprep.subr.bf16.mxu0 0
    %238 = vmatpush1.bf16.msra.mxu0 %v219
    %239 = vmatprep.subr.bf16.mxu0 0
    %240 = vmatpush1.bf16.msra.mxu0 %v218
    %241 = vmatprep.subr.bf16.mxu0 0
    %242 = vmatpush2.bf16.msra.mxu0 0
    %243 = vmatprep.subr.bf16.mxu0 0
    %244 = vmatpush2.bf16.msra.mxu0 0
    %245 = vmatprep.subr.bf16.mxu0 0
    %246 = vmatpush2.bf16.msra.mxu0 0
    %247 = vmatprep.subr.bf16.mxu0 0
    %248 = vmatpush2.bf16.msra.mxu0 0
    %249 = vmatprep.subr.bf16.mxu0 0
    %250 = vmatpush2.bf16.msra.mxu0 0
    %251 = vmatprep.subr.bf16.mxu0 0
    %252 = vmatpush2.bf16.msra.mxu0 0
    %253 = vmatprep.subr.bf16.mxu0 0
    %254 = vmatpush2.bf16.msra.mxu0 0
    %255 = vmatprep.subr.bf16.mxu0 0
    %256 = vmatpush2.bf16.msra.mxu0 0
    %257 = vmatprep.mubr.bf16.mxu0 0
    %258 = vmatmul.mubr.bf16.gmra.mxu0 %v223
    %v259 = vpop.f32.mrf.mxu0
    %v260 = vadd.f32 0.0, %v259
    %v261 = vpop.f32.mrf.mxu0
    %v262 = vpop.f32.mrf.mxu0
    %v263 = vpop.f32.mrf.mxu0
    %264 = vdwg.mxu0
    %v265 = vadd.f32 %v209, %v260
    %v267 = vlaneseq
    %v268 = vshrl.u32 %v267, 7
    %v269 = vsub.s32 0, %v268
    %v270 = vrot.slane %v190, %v269
    %v272 = vadd.f32 %v265, %v270
    %273 = vst.msk [vmem:[#allocation9] sm:$0xff] %vm180, %v272
    %v274 = vmax.f32 %v272, 0.0
    %v275 = vpack.c.bf16 %v274, %v274
    %v276 = vmul.f32 %v207, %v272
    %v278 = vsel %vm180, %v275, 0
    %280 = vmatprep.subr.bf16.mxu0 0
    %281 = vmatpush1.bf16.msra.mxu0 0
    %282 = vmatprep.subr.bf16.mxu0 0
    %283 = vmatpush1.bf16.msra.mxu0 0
    %284 = vmatprep.subr.bf16.mxu0 0
    %285 = vmatpush1.bf16.msra.mxu0 0
    %286 = vmatprep.subr.bf16.mxu0 0
    %287 = vmatpush1.bf16.msra.mxu0 0
    %288 = vmatprep.subr.bf16.mxu0 0
    %289 = vmatpush1.bf16.msra.mxu0 0
    %290 = vmatprep.subr.bf16.mxu0 0
    %291 = vmatpush1.bf16.msra.mxu0 0
    %292 = vmatprep.subr.bf16.mxu0 0
    %293 = vmatpush1.bf16.msra.mxu0 %v219
    %294 = vmatprep.subr.bf16.mxu0 0
    %295 = vmatpush1.bf16.msra.mxu0 %v218
    %296 = vmatprep.subr.bf16.mxu0 0
    %297 = vmatpush2.bf16.msra.mxu0 0
    %298 = vmatprep.subr.bf16.mxu0 0
    %299 = vmatpush2.bf16.msra.mxu0 0
    %300 = vmatprep.subr.bf16.mxu0 0
    %301 = vmatpush2.bf16.msra.mxu0 0
    %302 = vmatprep.subr.bf16.mxu0 0
    %303 = vmatpush2.bf16.msra.mxu0 0
    %304 = vmatprep.subr.bf16.mxu0 0
    %305 = vmatpush2.bf16.msra.mxu0 0
    %306 = vmatprep.subr.bf16.mxu0 0
    %307 = vmatpush2.bf16.msra.mxu0 0
    %308 = vmatprep.subr.bf16.mxu0 0
    %309 = vmatpush2.bf16.msra.mxu0 0
    %310 = vmatprep.subr.bf16.mxu0 0
    %311 = vmatpush2.bf16.msra.mxu0 0
    %312 = vmatprep.mubr.bf16.mxu0 0
    %313 = vmatmul.mubr.bf16.gmra.mxu0 %v278
    %v314 = vpop.f32.mrf.mxu0
    %v315 = vadd.f32 0.0, %v314
    %v316 = vpop.f32.mrf.mxu0
    %v317 = vpop.f32.mrf.mxu0
    %v318 = vpop.f32.mrf.mxu0
    %319 = vdwg.mxu0
    %v320 = vadd.f32 %v276, %v315
    %v321 = vadd.f32 %v320, %v270
    %s322 = scalar_lea.vmem [#allocation9], 8
    %323 = vst.msk [vmem:[%s322] sm:$0xff] %vm180, %v321
    %v324 = vsel %vm199, %v158, %v321
    %v325 = vmax.f32 %v324, 0.0
    %v326 = vpack.c.bf16 %v325, %v325
    %v327 = vmul.f32 %v207, %v324
    %v329 = vsel %vm180, %v326, 0
    %331 = vmatprep.subr.bf16.mxu0 0
    %332 = vmatpush1.bf16.msra.mxu0 0
    %333 = vmatprep.subr.bf16.mxu0 0
    %334 = vmatpush1.bf16.msra.mxu0 0
    %335 = vmatprep.subr.bf16.mxu0 0
    %336 = vmatpush1.bf16.msra.mxu0 0
    %337 = vmatprep.subr.bf16.mxu0 0
    %338 = vmatpush1.bf16.msra.mxu0 0
    %339 = vmatprep.subr.bf16.mxu0 0
    %340 = vmatpush1.bf16.msra.mxu0 0
    %341 = vmatprep.subr.bf16.mxu0 0
    %342 = vmatpush1.bf16.msra.mxu0 0
    %343 = vmatprep.subr.bf16.mxu0 0
    %344 = vmatpush1.bf16.msra.mxu0 %v219
    %345 = vmatprep.subr.bf16.mxu0 0
    %346 = vmatpush1.bf16.msra.mxu0 %v218
    %347 = vmatprep.subr.bf16.mxu0 0
    %348 = vmatpush2.bf16.msra.mxu0 0
    %349 = vmatprep.subr.bf16.mxu0 0
    %350 = vmatpush2.bf16.msra.mxu0 0
    %351 = vmatprep.subr.bf16.mxu0 0
    %352 = vmatpush2.bf16.msra.mxu0 0
    %353 = vmatprep.subr.bf16.mxu0 0
    %354 = vmatpush2.bf16.msra.mxu0 0
    %355 = vmatprep.subr.bf16.mxu0 0
    %356 = vmatpush2.bf16.msra.mxu0 0
    %357 = vmatprep.subr.bf16.mxu0 0
    %358 = vmatpush2.bf16.msra.mxu0 0
    %359 = vmatprep.subr.bf16.mxu0 0
    %360 = vmatpush2.bf16.msra.mxu0 0
    %361 = vmatprep.subr.bf16.mxu0 0
    %362 = vmatpush2.bf16.msra.mxu0 0
    %363 = vmatprep.mubr.bf16.mxu0 0
    %364 = vmatmul.mubr.bf16.gmra.mxu0 %v329
    %v365 = vpop.f32.mrf.mxu0
    %v366 = vadd.f32 0.0, %v365
    %v367 = vpop.f32.mrf.mxu0
    %v368 = vpop.f32.mrf.mxu0
    %v369 = vpop.f32.mrf.mxu0
    %370 = vdwg.mxu0
    %v371 = vadd.f32 %v327, %v366
    %v372 = vadd.f32 %v371, %v270
    %s373 = scalar_lea.vmem [#allocation9], 16
    %374 = vst.msk [vmem:[%s373] sm:$0xff] %vm180, %v372
    %v375 = vmax.f32 %v372, 0.0
    %v376 = vpack.c.bf16 %v375, %v375
    %v377 = vmul.f32 %v207, %v372
    %v379 = vsel %vm180, %v376, 0
    %381 = vmatprep.subr.bf16.mxu0 0
    %382 = vmatpush1.bf16.msra.mxu0 0
    %383 = vmatprep.subr.bf16.mxu0 0
    %384 = vmatpush1.bf16.msra.mxu0 0
    %385 = vmatprep.subr.bf16.mxu0 0
    %386 = vmatpush1.bf16.msra.mxu0 0
    %387 = vmatprep.subr.bf16.mxu0 0
    %388 = vmatpush1.bf16.msra.mxu0 0
    %389 = vmatprep.subr.bf16.mxu0 0
    %390 = vmatpush1.bf16.msra.mxu0 0
    %391 = vmatprep.subr.bf16.mxu0 0
    %392 = vmatpush1.bf16.msra.mxu0 0
    %393 = vmatprep.subr.bf16.mxu0 0
    %394 = vmatpush1.bf16.msra.mxu0 %v219
    %395 = vmatprep.subr.bf16.mxu0 0
    %396 = vmatpush1.bf16.msra.mxu0 %v218
    %397 = vmatprep.subr.bf16.mxu0 0
    %398 = vmatpush2.bf16.msra.mxu0 0
    %399 = vmatprep.subr.bf16.mxu0 0
    %400 = vmatpush2.bf16.msra.mxu0 0
    %401 = vmatprep.subr.bf16.mxu0 0
    %402 = vmatpush2.bf16.msra.mxu0 0
    %403 = vmatprep.subr.bf16.mxu0 0
    %404 = vmatpush2.bf16.msra.mxu0 0
    %405 = vmatprep.subr.bf16.mxu0 0
    %406 = vmatpush2.bf16.msra.mxu0 0
    %407 = vmatprep.subr.bf16.mxu0 0
    %408 = vmatpush2.bf16.msra.mxu0 0
    %409 = vmatprep.subr.bf16.mxu0 0
    %410 = vmatpush2.bf16.msra.mxu0 0
    %411 = vmatprep.subr.bf16.mxu0 0
    %412 = vmatpush2.bf16.msra.mxu0 0
    %413 = vmatprep.mubr.bf16.mxu0 0
    %414 = vmatmul.mubr.bf16.gmra.mxu0 %v379
    %v415 = vpop.f32.mrf.mxu0
    %v416 = vadd.f32 0.0, %v415
    %v417 = vpop.f32.mrf.mxu0
    %v418 = vpop.f32.mrf.mxu0
    %v419 = vpop.f32.mrf.mxu0
    %420 = vdwg.mxu0
    %v421 = vadd.f32 %v377, %v416
    %v422 = vadd.f32 %v421, %v270
    %s423 = scalar_lea.vmem [#allocation9], 24
    %424 = vst.msk [vmem:[%s423] sm:$0xff] %vm180, %v422
    %v425 = vsel %vm199, %v166, %v422
    %v426 = vmax.f32 %v425, 0.0
    %v427 = vpack.c.bf16 %v426, %v426
    %v428 = vmul.f32 %v207, %v425
    %v430 = vsel %vm180, %v427, 0
    %432 = vmatprep.subr.bf16.mxu0 0
    %433 = vmatpush1.bf16.msra.mxu0 0
    %434 = vmatprep.subr.bf16.mxu0 0
    %435 = vmatpush1.bf16.msra.mxu0 0
    %436 = vmatprep.subr.bf16.mxu0 0
    %437 = vmatpush1.bf16.msra.mxu0 0
    %438 = vmatprep.subr.bf16.mxu0 0
    %439 = vmatpush1.bf16.msra.mxu0 0
    %440 = vmatprep.subr.bf16.mxu0 0
    %441 = vmatpush1.bf16.msra.mxu0 0
    %442 = vmatprep.subr.bf16.mxu0 0
    %443 = vmatpush1.bf16.msra.mxu0 0
    %444 = vmatprep.subr.bf16.mxu0 0
    %445 = vmatpush1.bf16.msra.mxu0 %v219
    %446 = vmatprep.subr.bf16.mxu0 0
    %447 = vmatpush1.bf16.msra.mxu0 %v218
    %448 = vmatprep.subr.bf16.mxu0 0
    %449 = vmatpush2.bf16.msra.mxu0 0
    %450 = vmatprep.subr.bf16.mxu0 0
    %451 = vmatpush2.bf16.msra.mxu0 0
    %452 = vmatprep.subr.bf16.mxu0 0
    %453 = vmatpush2.bf16.msra.mxu0 0
    %454 = vmatprep.subr.bf16.mxu0 0
    %455 = vmatpush2.bf16.msra.mxu0 0
    %456 = vmatprep.subr.bf16.mxu0 0
    %457 = vmatpush2.bf16.msra.mxu0 0
    %458 = vmatprep.subr.bf16.mxu0 0
    %459 = vmatpush2.bf16.msra.mxu0 0
    %460 = vmatprep.subr.bf16.mxu0 0
    %461 = vmatpush2.bf16.msra.mxu0 0
    %462 = vmatprep.subr.bf16.mxu0 0
    %463 = vmatpush2.bf16.msra.mxu0 0
    %464 = vmatprep.mubr.bf16.mxu0 0
    %465 = vmatmul.mubr.bf16.gmra.mxu0 %v430
    %v466 = vpop.f32.mrf.mxu0
    %v467 = vadd.f32 0.0, %v466
    %v468 = vpop.f32.mrf.mxu0
    %v469 = vpop.f32.mrf.mxu0
    %v470 = vpop.f32.mrf.mxu0
    %471 = vdwg.mxu0
    %v472 = vadd.f32 %v428, %v467
    %v473 = vadd.f32 %v472, %v270
    %s474 = scalar_lea.vmem [#allocation9], 32
    %475 = vst.msk [vmem:[%s474] sm:$0xff] %vm180, %v473
    %v476 = vmax.f32 %v473, 0.0
    %v477 = vpack.c.bf16 %v476, %v476
    %v478 = vmul.f32 %v207, %v473
    %v480 = vsel %vm180, %v477, 0
    %482 = vmatprep.subr.bf16.mxu0 0
    %483 = vmatpush1.bf16.msra.mxu0 0
    %484 = vmatprep.subr.bf16.mxu0 0
    %485 = vmatpush1.bf16.msra.mxu0 0
    %486 = vmatprep.subr.bf16.mxu0 0
    %487 = vmatpush1.bf16.msra.mxu0 0
    %488 = vmatprep.subr.bf16.mxu0 0
    %489 = vmatpush1.bf16.msra.mxu0 0
    %490 = vmatprep.subr.bf16.mxu0 0
    %491 = vmatpush1.bf16.msra.mxu0 0
    %492 = vmatprep.subr.bf16.mxu0 0
    %493 = vmatpush1.bf16.msra.mxu0 0
    %494 = vmatprep.subr.bf16.mxu0 0
    %495 = vmatpush1.bf16.msra.mxu0 %v219
    %496 = vmatprep.subr.bf16.mxu0 0
    %497 = vmatpush1.bf16.msra.mxu0 %v218
    %498 = vmatprep.subr.bf16.mxu0 0
    %499 = vmatpush2.bf16.msra.mxu0 0
    %500 = vmatprep.subr.bf16.mxu0 0
    %501 = vmatpush2.bf16.msra.mxu0 0
    %502 = vmatprep.subr.bf16.mxu0 0
    %503 = vmatpush2.bf16.msra.mxu0 0
    %504 = vmatprep.subr.bf16.mxu0 0
    %505 = vmatpush2.bf16.msra.mxu0 0
    %506 = vmatprep.subr.bf16.mxu0 0
    %507 = vmatpush2.bf16.msra.mxu0 0
    %508 = vmatprep.subr.bf16.mxu0 0
    %509 = vmatpush2.bf16.msra.mxu0 0
    %510 = vmatprep.subr.bf16.mxu0 0
    %511 = vmatpush2.bf16.msra.mxu0 0
    %512 = vmatprep.subr.bf16.mxu0 0
    %513 = vmatpush2.bf16.msra.mxu0 0
    %514 = vmatprep.mubr.bf16.mxu0 0
    %515 = vmatmul.mubr.bf16.gmra.mxu0 %v480
    %v516 = vpop.f32.mrf.mxu0
    %v517 = vadd.f32 0.0, %v516
    %v518 = vpop.f32.mrf.mxu0
    %v519 = vpop.f32.mrf.mxu0
    %v520 = vpop.f32.mrf.mxu0
    %521 = vdwg.mxu0
    %v522 = vadd.f32 %v478, %v517
    %v523 = vadd.f32 %v522, %v270
    %s524 = scalar_lea.vmem [#allocation9], 40
    %525 = vst.msk [vmem:[%s524] sm:$0xff] %vm180, %v523
    %v526 = vsel %vm199, %v174, %v523
    %v527 = vmax.f32 %v526, 0.0
    %v528 = vpack.c.bf16 %v527, %v527
    %v529 = vmul.f32 %v207, %v526
    %v531 = vsel %vm180, %v528, 0
    %533 = vmatprep.subr.bf16.mxu0 0
    %534 = vmatpush1.bf16.msra.mxu0 0
    %535 = vmatprep.subr.bf16.mxu0 0
    %536 = vmatpush1.bf16.msra.mxu0 0
    %537 = vmatprep.subr.bf16.mxu0 0
    %538 = vmatpush1.bf16.msra.mxu0 0
    %539 = vmatprep.subr.bf16.mxu0 0
    %540 = vmatpush1.bf16.msra.mxu0 0
    %541 = vmatprep.subr.bf16.mxu0 0
    %542 = vmatpush1.bf16.msra.mxu0 0
    %543 = vmatprep.subr.bf16.mxu0 0
    %544 = vmatpush1.bf16.msra.mxu0 0
    %545 = vmatprep.subr.bf16.mxu0 0
    %546 = vmatpush1.bf16.msra.mxu0 %v219
    %547 = vmatprep.subr.bf16.mxu0 0
    %548 = vmatpush1.bf16.msra.mxu0 %v218
    %549 = vmatprep.subr.bf16.mxu0 0
    %550 = vmatpush2.bf16.msra.mxu0 0
    %551 = vmatprep.subr.bf16.mxu0 0
    %552 = vmatpush2.bf16.msra.mxu0 0
    %553 = vmatprep.subr.bf16.mxu0 0
    %554 = vmatpush2.bf16.msra.mxu0 0
    %555 = vmatprep.subr.bf16.mxu0 0
    %556 = vmatpush2.bf16.msra.mxu0 0
    %557 = vmatprep.subr.bf16.mxu0 0
    %558 = vmatpush2.bf16.msra.mxu0 0
    %559 = vmatprep.subr.bf16.mxu0 0
    %560 = vmatpush2.bf16.msra.mxu0 0
    %561 = vmatprep.subr.bf16.mxu0 0
    %562 = vmatpush2.bf16.msra.mxu0 0
    %563 = vmatprep.subr.bf16.mxu0 0
    %564 = vmatpush2.bf16.msra.mxu0 0
    %565 = vmatprep.mubr.bf16.mxu0 0
    %566 = vmatmul.mubr.bf16.gmra.mxu0 %v531
    %v567 = vpop.f32.mrf.mxu0
    %v568 = vadd.f32 0.0, %v567
    %v569 = vpop.f32.mrf.mxu0
    %v570 = vpop.f32.mrf.mxu0
    %v571 = vpop.f32.mrf.mxu0
    %572 = vdwg.mxu0
    %v573 = vadd.f32 %v529, %v568
    %v574 = vadd.f32 %v573, %v270
    %s575 = scalar_lea.vmem [#allocation9], 48
    %576 = vst.msk [vmem:[%s575] sm:$0xff] %vm180, %v574
    %v577 = vmax.f32 %v574, 0.0
    %v578 = vpack.c.bf16 %v577, %v577
    %v579 = vmul.f32 %v207, %v574
    %v581 = vsel %vm180, %v578, 0
    %583 = vmatprep.subr.bf16.mxu0 0
    %584 = vmatpush1.bf16.msra.mxu0 0
    %585 = vmatprep.subr.bf16.mxu0 0
    %586 = vmatpush1.bf16.msra.mxu0 0
    %587 = vmatprep.subr.bf16.mxu0 0
    %588 = vmatpush1.bf16.msra.mxu0 0
    %589 = vmatprep.subr.bf16.mxu0 0
    %590 = vmatpush1.bf16.msra.mxu0 0
    %591 = vmatprep.subr.bf16.mxu0 0
    %592 = vmatpush1.bf16.msra.mxu0 0
    %593 = vmatprep.subr.bf16.mxu0 0
    %594 = vmatpush1.bf16.msra.mxu0 0
    %595 = vmatprep.subr.bf16.mxu0 0
    %596 = vmatpush1.bf16.msra.mxu0 %v219
    %597 = vmatprep.subr.bf16.mxu0 0
    %598 = vmatpush1.bf16.msra.mxu0 %v218
    %599 = vmatprep.subr.bf16.mxu0 0
    %600 = vmatpush2.bf16.msra.mxu0 0
    %601 = vmatprep.subr.bf16.mxu0 0
    %602 = vmatpush2.bf16.msra.mxu0 0
    %603 = vmatprep.subr.bf16.mxu0 0
    %604 = vmatpush2.bf16.msra.mxu0 0
    %605 = vmatprep.subr.bf16.mxu0 0
    %606 = vmatpush2.bf16.msra.mxu0 0
    %607 = vmatprep.subr.bf16.mxu0 0
    %608 = vmatpush2.bf16.msra.mxu0 0
    %609 = vmatprep.subr.bf16.mxu0 0
    %610 = vmatpush2.bf16.msra.mxu0 0
    %611 = vmatprep.subr.bf16.mxu0 0
    %612 = vmatpush2.bf16.msra.mxu0 0
    %613 = vmatprep.subr.bf16.mxu0 0
    %614 = vmatpush2.bf16.msra.mxu0 0
    %615 = vmatprep.mubr.bf16.mxu0 0
    %616 = vmatmul.mubr.bf16.gmra.mxu0 %v581
    %v617 = vpop.f32.mrf.mxu0
    %v618 = vadd.f32 0.0, %v617
    %v619 = vpop.f32.mrf.mxu0
    %v620 = vpop.f32.mrf.mxu0
    %v621 = vpop.f32.mrf.mxu0
    %622 = vdwg.mxu0
    %v623 = vadd.f32 %v579, %v618
    %v624 = vadd.f32 %v623, %v270
    %s625 = scalar_lea.vmem [#allocation9], 56
    %626 = vst.msk [vmem:[%s625] sm:$0xff] %vm180, %v624
    // Predicated region
    $region34: #{tpu_custom_call.1} parent=1 // pred_check
      _
    $region35: #{tpu_custom_call.1} parent=1 // pred_check_branch
      %628 = sbr.rel (0) target = $region37
    $region36: #{tpu_custom_call.1} parent=1 // pred_region
      %s630 = ssub.s32 1024, 1024
      %631 = vsyncadd [#allocation4], %s630
      %s632 = sshll.u32 [#allocation8], 4
      %s633 = int_to_ptr.vmem [resolvable:$true] %s632
      %638 = dma.vmem_to_hbm [thread:$0]  %s633, 1024, %s5, [#allocation4], 128, 128, 8
    $region37: #{tpu_custom_call.1} parent=1 // pred_fallthru
      _
    // Predicated region
    $region38: #{tpu_custom_call.1} parent=1 // pred_check
      _
    $region39: #{tpu_custom_call.1} parent=1 // pred_check_branch
      %640 = sbr.rel (0) target = $region41
    $region40: #{tpu_custom_call.1} parent=1 // pred_region
      %s642 = ssub.s32 1024, 1024
      %643 = vsyncadd [#allocation10], %s642
      %s644 = sshll.u32 [#allocation9], 4
      %s645 = int_to_ptr.vmem [resolvable:$true] %s644
      %650 = dma.vmem_to_hbm [thread:$0]  %s645, 1024, %s6, [#allocation10], 128, 128, 8
    $region41: #{tpu_custom_call.1} parent=1 // pred_fallthru
      _
    // Predicated region
    $region42: #{tpu_custom_call.1} parent=1 // pred_check
      _
    $region43: #{tpu_custom_call.1} parent=1 // pred_check_branch
      %652 = sbr.rel (0) target = $region45
    $region44: #{tpu_custom_call.1} parent=1 // pred_region
      %653 = dma.done [#allocation4], 1024
    $region45: #{tpu_custom_call.1} parent=1 // pred_fallthru
      _
    // Predicated region
    $region46: #{tpu_custom_call.1} parent=1 // pred_check
      _
    $region47: #{tpu_custom_call.1} parent=1 // pred_check_branch
      %655 = sbr.rel (0) target = $region49
    $region48: #{tpu_custom_call.1} parent=1 // pred_region
      %656 = dma.done [#allocation10], 1024
    $region49: #{tpu_custom_call.1} parent=1 // pred_fallthru
      _
    %657 = vsyncpa [#allocation3], 1
    %658 = vsyncpa [#allocation6], 1
    %659 = vsyncpa [#allocation4], 1
    %660 = vsyncpa [#allocation10], 1

</llo_original>
